<compile_context>
chip_gen: v5e
topology: v5e:2x2
jax: 0.10.0
libtpu: 0.0.40
codegen_flags: <defaults>
</compile_context>

<pallas_src>
import functools

import jax
import jax.numpy as jnp
from jax import lax
from jax.experimental import pallas as pl
from jax.experimental.pallas import tpu as pltpu


def _squeeze_ce_kernel(logits_ref, labels_ref, out_ref, *, n_total):
    """One grid step: partial sum of per-row CE losses for this row tile.

    logits_ref: (TILE_N, C) native-dtype logits tile in VMEM
    labels_ref: (TILE_N, 1) int32 class indices tile in VMEM
    out_ref:    (1, 8, 128) float32 lane-dense partial-sum block (one / step)
    """
    i = pl.program_id(0)

    # Cast in VMEM (free relative to the DMA) rather than in the wrapper.
    logits = logits_ref[...].astype(jnp.float32)              # (TILE_N, C)
    labels = labels_ref[...]                                   # (TILE_N, 1) i32
    tile_n = logits.shape[0]

    # Gather target-class logit from the *raw* f32 logits via a one-hot mask
    # (no dynamic gather); doing this before the shift lets `shifted` die
    # immediately after the exp-sum.
    col = lax.broadcasted_iota(jnp.int32, logits.shape, 1)     # lane index
    tgt = jnp.sum(jnp.where(col == labels, logits, 0.0),
                  axis=-1, keepdims=True)                      # (TILE_N, 1)

    # Numerically stable logsumexp.
    m = jnp.max(logits, axis=-1, keepdims=True)                # (TILE_N, 1)
    sum_exp = jnp.sum(jnp.exp(logits - m), axis=-1, keepdims=True)

    per_row = m + jnp.log(sum_exp) - tgt                       # -log p[target]

    # Mask rows past the true batch size (ragged last tile): padded data may
    # be garbage/NaN, so select (not multiply) it away.
    row = lax.broadcasted_iota(jnp.int32, (tile_n, 1), 0) + i * tile_n
    per_row = jnp.where(row < n_total, per_row, 0.0)

    psum = jnp.sum(per_row)                                    # partial CE sum
    # Lane-dense (8,128)-aligned block write: one unmasked vst, no carry.
    out_ref[...] = jnp.full(out_ref.shape, psum, jnp.float32)


def _vmem_params():
    """Generation-aware scoped-VMEM limit and tile-sizing budget (bytes)."""
    try:
        phys = int(pltpu.get_tpu_info().vmem_capacity_bytes)
    except Exception:
        phys = 64 << 20  # conservative fallback (safe on every generation)
    # v7x (64 MiB physical) -> 48 MiB limit; v5e/v6e (128 MiB) -> 96 MiB limit.
    vmem_limit = min((phys * 3) // 4, 96 << 20)
    budget = (vmem_limit * 3) // 4  # headroom for compiler scratch / out bufs
    return vmem_limit, budget


def _choose_tile_n(n: int, c: int, in_itemsize: int, budget: int,
                   max_tile=None) -> int:
    """Pick the largest row tile whose live VMEM footprint fits `budget`."""
    # Per-row bytes held live in VMEM:
    #   2x input logits tile (double-buffered DMA)        : 2 * C * itemsize
    #   ~3 full-width f32 intermediates (f32 cast logits,
    #     shifted/exp tensor, one-hot compare)            : 3 * C * 4
    #   labels padded to (TILE_N, 128) i32, double-buffered: 2 * 128 * 4
    per_row = c * (2 * in_itemsize + 3 * 4) + 2 * 128 * 4
    tile = budget // max(per_row, 1)
    tile = int(max(8, (tile // 8) * 8))          # no artificial row cap
    if max_tile is not None:
        tile = min(tile, max(8, (int(max_tile) // 8) * 8))
    if n <= tile:
        return n  # single exact-fit tile (block == full dim, no padding)
    return tile


def squeeze_cross_entropy_loss(y_pred: jax.Array, y_true: jax.Array,
                               *, tile_n=None) -> jax.Array:
    """y_pred: (N, C) float logits (any float dtype); y_true: (N, 1) int labels.

    Returns scalar float32 loss matching nn.CrossEntropyLoss()(y_pred,
    y_true.squeeze(-1)) with reduction='mean'.
    """
    n, c = y_pred.shape
    assert y_true.shape == (n, 1), y_true.shape
    labels = y_true.astype(jnp.int32)

    vmem_limit, budget = _vmem_params()
    tn = _choose_tile_n(n, c, jnp.dtype(y_pred.dtype).itemsize, budget, tile_n)
    steps = pl.cdiv(n, tn)

    kernel = functools.partial(_squeeze_ce_kernel, n_total=n)

    partials = pl.pallas_call(
        kernel,
        out_shape=jax.ShapeDtypeStruct((steps, 8, 128), jnp.float32),
        grid=(steps,),
        in_specs=[
            pl.BlockSpec((tn, c), lambda i: (i, 0)),   # logits row tile
            pl.BlockSpec((tn, 1), lambda i: (i, 0)),   # labels row tile
        ],
        out_specs=pl.BlockSpec((1, 8, 128), lambda i: (i, 0, 0)),
        compiler_params=pltpu.CompilerParams(
            dimension_semantics=("parallel",),         # no carry -> parallel
            vmem_limit_bytes=vmem_limit,
        ),
    )(y_pred, labels)

    # Final reduce over `steps` partial sums: trivial XLA op; reduction='mean'.
    return jnp.sum(partials[:, 0, 0]) / jnp.float32(n)


if __name__ == "__main__":
    key = jax.random.PRNGKey(0)
    k1, k2, k3, k4 = jax.random.split(key, 4)

    # Case 1: tiny f32 problem (single tile), matches the module's toy usage.
    N1, C1 = 8, 32
    yp1 = jax.random.normal(k1, (N1, C1), dtype=jnp.float32)
    yt1 = jax.random.randint(k2, (N1, 1), 0, C1, dtype=jnp.int32)
    loss1 = jax.block_until_ready(squeeze_cross_entropy_loss(yp1, yt1))
    logp1 = jax.nn.log_softmax(yp1, axis=-1)
    ref1 = -jnp.mean(jnp.take_along_axis(logp1, yt1, axis=-1))
    assert jnp.allclose(loss1, ref1, atol=1e-5, rtol=1e-5), (loss1, ref1)

    # Case 2: bf16 logits, multi-tile parallel grid with a ragged last tile
    # (exercises cast-in-kernel, per-tile partial sums, and row masking).
    N2, C2 = 300, 128
    yp2 = jax.random.normal(k3, (N2, C2), dtype=jnp.bfloat16)
    yt2 = jax.random.randint(k4, (N2, 1), 0, C2, dtype=jnp.int32)
    loss2 = jax.block_until_ready(
        squeeze_cross_entropy_loss(yp2, yt2, tile_n=128))
    logp2 = jax.nn.log_softmax(yp2.astype(jnp.float32), axis=-1)
    ref2 = -jnp.mean(jnp.take_along_axis(logp2, yt2, axis=-1))
    assert jnp.allclose(loss2, ref2, atol=1e-4, rtol=1e-4), (loss2, ref2)

    print("KERNEL_OK")
</pallas_src>

<mosaic_0001>
module attributes {stable_mosaic.version = 11 : i64} {
  func.func @_squeeze_ce_kernel(%arg0: i32, %arg1: memref<8x32xf32, #tpu.memory_space<vmem>>, %arg2: memref<8x1xi32, #tpu.memory_space<vmem>>, %arg3: memref<1x8x128xf32, #tpu.memory_space<vmem>>) attributes {dimension_semantics = [#tpu.dimension_semantics<parallel>], iteration_bounds = array<i64: 1>, scalar_prefetch = 0 : i64, scratch_operands = 0 : i64, tpu.core_type = #tpu.core_type<tc>, window_params = [{transform_indices = @transform_0, window_bounds = array<i64: 8, 32>}, {transform_indices = @transform_1, window_bounds = array<i64: 8, 1>}, {transform_indices = @transform_2, window_bounds = array<i64: 1, 8, 128>}]} {
    %c0 = arith.constant 0 : index
    %c0_0 = arith.constant 0 : index
    %0 = vector.load %arg1[%c0, %c0_0] : memref<8x32xf32, #tpu.memory_space<vmem>>, vector<8x32xf32>
    %c0_1 = arith.constant 0 : index
    %c0_2 = arith.constant 0 : index
    %1 = vector.load %arg2[%c0_1, %c0_2] : memref<8x1xi32, #tpu.memory_space<vmem>>, vector<8x1xi32>
    %2 = tpu.iota {dimensions = array<i32: 1>} : vector<8x32xi32>
    %3 = vector.broadcast %1 : vector<8x1xi32> to vector<8x32xi32>
    %4 = arith.cmpi eq, %2, %3 : vector<8x32xi32>
    %cst = arith.constant 0.000000e+00 : f32
    %5 = vector.broadcast %cst : f32 to vector<8x32xf32>
    %6 = arith.select %4, %0, %5 : vector<8x32xi1>, vector<8x32xf32>
    %cst_3 = arith.constant dense<0.000000e+00> : vector<8xf32>
    %7 = vector.multi_reduction <add>, %6, %cst_3 [1] : vector<8x32xf32> to vector<8xf32>
    %8 = vector.shape_cast %7 : vector<8xf32> to vector<8x1xf32>
    %cst_4 = arith.constant dense<0xFF800000> : vector<8xf32>
    %9 = vector.multi_reduction <maximumf>, %0, %cst_4 [1] : vector<8x32xf32> to vector<8xf32>
    %10 = vector.shape_cast %9 : vector<8xf32> to vector<8x1xf32>
    %11 = vector.broadcast %10 : vector<8x1xf32> to vector<8x32xf32>
    %12 = arith.subf %0, %11 : vector<8x32xf32>
    %13 = math.exp %12 : vector<8x32xf32>
    %cst_5 = arith.constant dense<0.000000e+00> : vector<8xf32>
    %14 = vector.multi_reduction <add>, %13, %cst_5 [1] : vector<8x32xf32> to vector<8xf32>
    %15 = vector.shape_cast %14 : vector<8xf32> to vector<8x1xf32>
    %16 = math.log %15 : vector<8x1xf32>
    %17 = arith.addf %10, %16 : vector<8x1xf32>
    %18 = arith.subf %17, %8 : vector<8x1xf32>
    %19 = tpu.iota {dimensions = array<i32: 0>} : vector<8x1xi32>
    %c8_i32 = arith.constant 8 : i32
    %20 = arith.muli %arg0, %c8_i32 : i32
    %21 = vector.broadcast %20 : i32 to vector<8x1xi32>
    %22 = arith.addi %19, %21 : vector<8x1xi32>
    %c8_i32_6 = arith.constant 8 : i32
    %23 = vector.broadcast %c8_i32_6 : i32 to vector<8x1xi32>
    %24 = arith.cmpi slt, %22, %23 : vector<8x1xi32>
    %cst_7 = arith.constant 0.000000e+00 : f32
    %25 = vector.broadcast %cst_7 : f32 to vector<8x1xf32>
    %26 = arith.select %24, %18, %25 : vector<8x1xi1>, vector<8x1xf32>
    %27 = vector.shape_cast %26 : vector<8x1xf32> to vector<1x8x1xf32>
    %cst_8 = arith.constant dense<0.000000e+00> : vector<1xf32>
    %28 = vector.multi_reduction <add>, %27, %cst_8 [1, 2] : vector<1x8x1xf32> to vector<1xf32>
    %29 = vector.shape_cast %28 : vector<1xf32> to vector<1x1x1xf32>
    %30 = vector.extract %29[0, 0, 0] : f32 from vector<1x1x1xf32>
    %31 = vector.broadcast %30 : f32 to vector<1x8x128xf32>
    %c0_9 = arith.constant 0 : index
    %c0_10 = arith.constant 0 : index
    %c0_11 = arith.constant 0 : index
    %32 = vector.load %arg3[%c0_9, %c0_10, %c0_11] : memref<1x8x128xf32, #tpu.memory_space<vmem>>, vector<1x8x128xf32>
    tpu.vector_store %arg3[%c0_9, %c0_10, %c0_11], %31 {strides = array<i32>} : memref<1x8x128xf32, #tpu.memory_space<vmem>>, vector<1x8x128xf32>,
    return
  }
  func.func @transform_0(%arg0: i32) -> (i32, i32) {
    %c0_i32 = arith.constant 0 : i32
    %c0_i32_0 = arith.constant 0 : i32
    return %arg0, %c0_i32 : i32, i32
  }
  func.func @transform_1(%arg0: i32) -> (i32, i32) {
    %c0_i32 = arith.constant 0 : i32
    %c0_i32_0 = arith.constant 0 : i32
    return %arg0, %c0_i32 : i32, i32
  }
  func.func @transform_2(%arg0: i32) -> (i32, i32, i32) {
    %c0_i32 = arith.constant 0 : i32
    %c0_i32_0 = arith.constant 0 : i32
    %c0_i32_1 = arith.constant 0 : i32
    return %arg0, %c0_i32, %c0_i32_0 : i32, i32, i32
  }
}

</mosaic_0001>

<llo_original>
// kernel: tpu_custom_call.1
$region0: #{tpu_custom_call.1}
  #allocation0 [shape = 'u32[]', space=smem, size = 0x4, offset = 0x4, fixed_abs, tag = 'smem constant byte address 0x4 - core index']
  #allocation1 [shape = 'u32[72,128]{1,0:T(1,128)}', space=vmem, size = 0x9000, scoped, tag = 'internal scratch']
  %s0 = inlined_call_operand.vmem [shape: f32[8,32], index: 0, kind: input, shape index: {}]
  %s1 = inlined_call_operand.vmem [shape: s32[8,1], index: 1, kind: input, shape index: {}]
  %s2 = inlined_call_operand.hbm [shape: f32[1,8,128], index: 2, kind: output, shape index: {}]
  %s3 = sld [smem:[#allocation0]]
  $region18: #{tpu_custom_call.1} parent=0
    _
  %s5 = ssub.s32 1, %s3
  %s6 = scalar_select 0, %s5, %s3
  $region1: #{tpu_custom_call.1} parent=0
    #allocation2 [shape = 'u8[4096]{0}', space=vmem, size = 0x1000, scoped, tag = 'output window, operand 0, single buffered']
    #allocation3 [shape = 's32[1]{0}', space=sflag, size = 0x4, scoped, tag = 'scoped memory for tpu_custom_call.1']
    %7 = vsyncpa [#allocation3], 0
    // Predicated region
    $region2: #{tpu_custom_call.1} parent=1 // pred_check
      _
    $region3: #{tpu_custom_call.1} parent=1 // pred_check_branch
      %9 = sbr.rel (0) target = $region5
    $region4: #{tpu_custom_call.1} parent=1 // pred_region
      _
    $region5: #{tpu_custom_call.1} parent=1 // pred_fallthru
      _
    // Predicated region
    $region6: #{tpu_custom_call.1} parent=1 // pred_check
      _
    $region7: #{tpu_custom_call.1} parent=1 // pred_check_branch
      %11 = sbr.rel (0) target = $region9
    $region8: #{tpu_custom_call.1} parent=1 // pred_region
      _
    $region9: #{tpu_custom_call.1} parent=1 // pred_fallthru
      _
    %v12 = vld [vmem:[%s0] sm:$0xff]
    %v13 = vld [vmem:[%s1] sm:$0xff]
    %v14 = vlaneseq
    %v15 = vand.u32 %v14, 127
    %16 = vset.pattern.permute.xlu0 0
    %17 = vperm.xlu0 %16, %v13
    %v18 = vpop.permute.xlu0 %17
    %vm19 = vcmp.eq.s32.totalorder %v15, %v18
    %v20 = vsel %vm19, %v12, 0.0
    %vm21 = vcmask 261120
    %v22 = vsel %vm21, %v20, 0.0
    %23 = vadd.xlane.f32.xlu0 %v22
    %v24 = vpop.xlane.xlu0 %23
    %v25 = vsel %vm21, %v12, -inf
    %26 = vmax.xlane.f32.xlu0 %v25
    %v27 = vpop.xlane.xlu0 %26
    %v28 = vsub.f32 %v12, %v27
    %v29 = vmul.f32 %v28, 1.442695
    %v30 = vpow.pop %v29
    %v31 = vsel %vm21, %v30, 0.0
    %32 = vadd.xlane.f32.xlu0 %v31
    %v33 = vpop.xlane.xlu0 %32
    %v34 = vlog2.pop %v33
    %v35 = vmul.f32 %v34, 0.6931472
    %v36 = vadd.f32 %v27, %v35
    %v37 = vsub.f32 %v36, %v24
    %v38 = vlaneseq
    %v39 = vshrl.u32 %v38, 7
    %s40 = smul.u32 0, 8
    %v41 = vstv %s40
    %v42 = vadd.s32 %v39, %v41
    %vm43 = vcmp.lt.s32.totalorder %v42, 8
    %v44 = vsel %vm43, %v37, 0.0
    %vm45 = vcmask 7168
    %v46 = vsel %vm45, %v44, 0.0
    %47 = vadd.xlane.f32.xlu0 %v46
    %v48 = vpop.xlane.xlu0 %47
    %v49 = vrot.slane %v48, 4
    %v50 = vadd.f32 %v48, %v49
    %v51 = vrot.slane %v50, 2
    %v52 = vadd.f32 %v50, %v51
    %v53 = vrot.slane %v52, 1
    %v54 = vadd.f32 %v52, %v53
    %s55 = vtos %v54
    %v56 = vstv %s55
    %57 = vst [vmem:[#allocation2] sm:$0xff] %v56
    // Predicated region
    $region10: #{tpu_custom_call.1} parent=1 // pred_check
      _
    $region11: #{tpu_custom_call.1} parent=1 // pred_check_branch
      %59 = sbr.rel (0) target = $region13
    $region12: #{tpu_custom_call.1} parent=1 // pred_region
      %61 = vsyncadd [#allocation3], 0
      %s63 = sshll.u32 [#allocation2], 4
      %s64 = int_to_ptr.vmem [resolvable:$true] %s63
      %s65 = sshll.u32 %s2, 4
      %s66 = int_to_ptr.hbm [resolvable:$true] %s65
      %68 = dma.vmem_to_hbm [thread:$0]  %s64, 128, %s66, [#allocation3]
    $region13: #{tpu_custom_call.1} parent=1 // pred_fallthru
      _
    // Predicated region
    $region14: #{tpu_custom_call.1} parent=1 // pred_check
      _
    $region15: #{tpu_custom_call.1} parent=1 // pred_check_branch
      %70 = sbr.rel (0) target = $region17
    $region16: #{tpu_custom_call.1} parent=1 // pred_region
      %72 = dma.done [#allocation3], 128
    $region17: #{tpu_custom_call.1} parent=1 // pred_fallthru
      _
    %73 = vsyncpa [#allocation3], 1

</llo_original>
